<compile_context>
chip_gen: v6e
topology: v6e:2x2x1
jax: 0.10.0
libtpu: 0.0.40
codegen_flags: <defaults>
</compile_context>

<pallas_src>
import functools

import jax
import jax.numpy as jnp
from jax.experimental import pallas as pl
from jax.experimental.pallas import tpu as pltpu


def _lang_embed_kernel(x_ref, w_ref, b_ref, o_ref, acc_ref):
    """One (H-tile, K-tile) grid step of SiLU(x) @ W + b."""
    k = pl.program_id(1)

    @pl.when(k == 0)
    def _():
        acc_ref[...] = jnp.zeros_like(acc_ref)

    # SiLU in f32 on the VPU/EUP (safe on v5e), then feed the MXU bf16
    # operands with f32 accumulation.
    x = x_ref[...].astype(jnp.float32)
    silu = (x * jax.nn.sigmoid(x)).astype(jnp.bfloat16)
    acc_ref[...] += jnp.dot(silu, w_ref[...],
                            preferred_element_type=jnp.float32)

    @pl.when(k == pl.num_programs(1) - 1)
    def _():
        o_ref[...] = (acc_ref[...] + b_ref[...].astype(jnp.float32)
                      ).astype(o_ref.dtype)


def _pick_tile(dim, cap):
    """Largest multiple of 128 that divides `dim` and is <= cap; else full dim."""
    if dim % 128 != 0:
        return dim
    t = min((cap // 128) * 128, dim)
    while dim % t != 0:
        t -= 128
    return max(t, 128)


@functools.partial(jax.jit, static_argnames=())
def language_embedder(language_embed, weight, bias):
    """language_embed: (B, D); weight: (D, H); bias: (H,) -> (B, H)."""
    B, D = language_embed.shape
    H = weight.shape[1]

    # Weight feeds the MXU and dominates HBM bytes -> store/move it as bf16.
    w_bf16 = weight.astype(jnp.bfloat16)
    bias2d = bias.reshape(1, H)

    # N tile: multiple of 128 (lane-dense stores, filled MXU). Prefer >= 2
    # independent grid steps along H so v7x can shard across its 2 TCs.
    tn = _pick_tile(H, 256)
    if H % 128 == 0 and H // tn < 2 and H // 128 >= 2:
        tn = _pick_tile(H, 128)
    # K tile: keeps per-step weight tiles small (<= 512 x 256 bf16) so
    # double-buffering fits easily under the v7x 64 MiB VMEM budget.
    tk = _pick_tile(D, 512)

    grid = (H // tn, D // tk)

    return pl.pallas_call(
        _lang_embed_kernel,
        out_shape=jax.ShapeDtypeStruct((B, H), language_embed.dtype),
        grid=grid,
        in_specs=[
            pl.BlockSpec((B, tk), lambda j, k: (0, k)),   # activations
            pl.BlockSpec((tk, tn), lambda j, k: (k, j)),  # weight tile (bf16)
            pl.BlockSpec((1, tn), lambda j, k: (0, j)),   # bias tile
        ],
        out_specs=pl.BlockSpec((B, tn), lambda j, k: (0, j)),
        scratch_shapes=[pltpu.VMEM((B, tn), jnp.float32)],
        compiler_params=pltpu.CompilerParams(
            dimension_semantics=("parallel", "arbitrary"),
            vmem_limit_bytes=32 * 1024 * 1024,
        ),
    )(language_embed, w_bf16, bias2d)
    # TODO(synk): at tiny shapes (B=8, D=512, H=256) this op is overhead-bound;
    # the bigger lever is fusing it into an adjacent kernel / batching rows.


def _reference(language_embed, weight, bias):
    x = language_embed.astype(jnp.float32)
    return (jax.nn.silu(x) @ weight.astype(jnp.float32)
            + bias.astype(jnp.float32)).astype(language_embed.dtype)


if __name__ == "__main__":
    # Small shapes consistent with the module: embedding_dim=512, hidden_size=256.
    B, EMBEDDING_DIM, HIDDEN_SIZE = 8, 512, 256

    key = jax.random.PRNGKey(0)
    k_x, k_w, k_b = jax.random.split(key, 3)

    language_embed = jax.random.normal(k_x, (B, EMBEDDING_DIM), dtype=jnp.float32)

    # Deterministic parameter init mimicking nn.Linear (uniform +/- 1/sqrt(fan_in)).
    bound = 1.0 / (EMBEDDING_DIM ** 0.5)
    weight = jax.random.uniform(k_w, (EMBEDDING_DIM, HIDDEN_SIZE),
                                minval=-bound, maxval=bound, dtype=jnp.float32)
    bias = jax.random.uniform(k_b, (HIDDEN_SIZE,),
                              minval=-bound, maxval=bound, dtype=jnp.float32)

    out = language_embedder(language_embed, weight, bias)
    jax.block_until_ready(out)

    ref = _reference(language_embed, weight, bias)
    assert out.shape == (B, HIDDEN_SIZE)
    # bf16 matmul operands (f32 accumulation) -> looser tolerance than pure f32.
    assert jnp.allclose(out, ref, atol=2e-2, rtol=2e-2), "mismatch vs reference"

    print("KERNEL_OK")
</pallas_src>

<mosaic_0001>
module attributes {stable_mosaic.version = 11 : i64} {
  func.func @_lang_embed_kernel(%arg0: i32, %arg1: i32, %arg2: memref<8x512xf32, #tpu.memory_space<vmem>>, %arg3: memref<512x128xbf16, #tpu.memory_space<vmem>>, %arg4: memref<1x128xf32, #tpu.memory_space<vmem>>, %arg5: memref<8x128xf32, #tpu.memory_space<vmem>>, %arg6: memref<8x128xf32, #tpu.memory_space<vmem>>) attributes {dimension_semantics = [#tpu.dimension_semantics<parallel>, #tpu.dimension_semantics<arbitrary>], iteration_bounds = array<i64: 2, 1>, scalar_prefetch = 0 : i64, scratch_operands = 1 : i64, tpu.core_type = #tpu.core_type<tc>, window_params = [{transform_indices = @transform_0, window_bounds = array<i64: 8, 512>}, {transform_indices = @transform_1, window_bounds = array<i64: 512, 128>}, {transform_indices = @transform_2, window_bounds = array<i64: 1, 128>}, {transform_indices = @transform_3, window_bounds = array<i64: 8, 128>}]} {
    %c0_i32 = arith.constant 0 : i32
    %0 = arith.cmpi eq, %arg1, %c0_i32 : i32
    %1 = arith.extui %0 : i1 to i32
    %c0_i32_0 = arith.constant 0 : i32
    %2 = arith.cmpi ne, %1, %c0_i32_0 : i32
    scf.if %2 {
      %cst_11 = arith.constant 0.000000e+00 : f32
      %19 = vector.broadcast %cst_11 : f32 to vector<8x128xf32>
      %c0_12 = arith.constant 0 : index
      %c0_13 = arith.constant 0 : index
      %20 = vector.load %arg6[%c0_12, %c0_13] : memref<8x128xf32, #tpu.memory_space<vmem>>, vector<8x128xf32>
      tpu.vector_store %arg6[%c0_12, %c0_13], %19 {strides = array<i32>} : memref<8x128xf32, #tpu.memory_space<vmem>>, vector<8x128xf32>,
    } else {
    }
    %c0 = arith.constant 0 : index
    %c0_1 = arith.constant 0 : index
    %3 = vector.load %arg2[%c0, %c0_1] : memref<8x512xf32, #tpu.memory_space<vmem>>, vector<8x512xf32>
    %4 = arith.negf %3 : vector<8x512xf32>
    %5 = math.exp %4 : vector<8x512xf32>
    %cst = arith.constant 1.000000e+00 : f32
    %6 = vector.broadcast %cst : f32 to vector<8x512xf32>
    %7 = arith.addf %6, %5 : vector<8x512xf32>
    %8 = arith.divf %6, %7 : vector<8x512xf32>
    %9 = arith.mulf %3, %8 : vector<8x512xf32>
    %10 = arith.truncf %9 : vector<8x512xf32> to vector<8x512xbf16>
    %c0_2 = arith.constant 0 : index
    %c0_3 = arith.constant 0 : index
    %11 = vector.load %arg6[%c0_2, %c0_3] : memref<8x128xf32, #tpu.memory_space<vmem>>, vector<8x128xf32>
    %c0_4 = arith.constant 0 : index
    %c0_5 = arith.constant 0 : index
    %12 = vector.load %arg3[%c0_4, %c0_5] : memref<512x128xbf16, #tpu.memory_space<vmem>>, vector<512x128xbf16>
    %cst_6 = arith.constant dense<0.000000e+00> : vector<8x128xf32>
    %13 = tpu.matmul %10, %12, %cst_6 {dimension_numbers = #tpu.dot_dimension_numbers<[1], [0], [0], [1], [0, 0, 1, 1], [], []>} : vector<8x512xbf16>, vector<512x128xbf16>, vector<8x128xf32> -> vector<8x128xf32>
    %14 = arith.addf %11, %13 : vector<8x128xf32>
    %c0_7 = arith.constant 0 : index
    %c0_8 = arith.constant 0 : index
    %15 = vector.load %arg6[%c0_7, %c0_8] : memref<8x128xf32, #tpu.memory_space<vmem>>, vector<8x128xf32>
    tpu.vector_store %arg6[%c0_7, %c0_8], %14 {strides = array<i32>} : memref<8x128xf32, #tpu.memory_space<vmem>>, vector<8x128xf32>,
    %c0_i32_9 = arith.constant 0 : i32
    %16 = arith.cmpi eq, %arg1, %c0_i32_9 : i32
    %17 = arith.extui %16 : i1 to i32
    %c0_i32_10 = arith.constant 0 : i32
    %18 = arith.cmpi ne, %17, %c0_i32_10 : i32
    scf.if %18 {
      %c0_11 = arith.constant 0 : index
      %c0_12 = arith.constant 0 : index
      %19 = vector.load %arg6[%c0_11, %c0_12] : memref<8x128xf32, #tpu.memory_space<vmem>>, vector<8x128xf32>
      %c0_13 = arith.constant 0 : index
      %c0_14 = arith.constant 0 : index
      %20 = vector.load %arg4[%c0_13, %c0_14] : memref<1x128xf32, #tpu.memory_space<vmem>>, vector<1x128xf32>
      %21 = vector.broadcast %20 : vector<1x128xf32> to vector<8x128xf32>
      %22 = arith.addf %19, %21 : vector<8x128xf32>
      %c0_15 = arith.constant 0 : index
      %c0_16 = arith.constant 0 : index
      %23 = vector.load %arg5[%c0_15, %c0_16] : memref<8x128xf32, #tpu.memory_space<vmem>>, vector<8x128xf32>
      tpu.vector_store %arg5[%c0_15, %c0_16], %22 {strides = array<i32>} : memref<8x128xf32, #tpu.memory_space<vmem>>, vector<8x128xf32>,
    } else {
    }
    return
  }
  func.func @transform_0(%arg0: i32, %arg1: i32) -> (i32, i32) {
    %c0_i32 = arith.constant 0 : i32
    %c0_i32_0 = arith.constant 0 : i32
    return %c0_i32, %arg1 : i32, i32
  }
  func.func @transform_1(%arg0: i32, %arg1: i32) -> (i32, i32) {
    %c0_i32 = arith.constant 0 : i32
    return %arg1, %arg0 : i32, i32
  }
  func.func @transform_2(%arg0: i32, %arg1: i32) -> (i32, i32) {
    %c0_i32 = arith.constant 0 : i32
    %c0_i32_0 = arith.constant 0 : i32
    return %c0_i32, %arg0 : i32, i32
  }
  func.func @transform_3(%arg0: i32, %arg1: i32) -> (i32, i32) {
    %c0_i32 = arith.constant 0 : i32
    %c0_i32_0 = arith.constant 0 : i32
    return %c0_i32, %arg0 : i32, i32
  }
}

</mosaic_0001>

<llo_original>
// kernel: language_embedder.1
$region0: #{language_embedder.1}
  #allocation0 [shape = 'u32[]', space=smem, size = 0x4, offset = 0x4, fixed_abs, tag = 'smem constant byte address 0x4 - core index']
  #allocation1 [shape = 'u32[144,128]{1,0:T(1,128)}', space=vmem, size = 0x12000, scoped, tag = 'internal scratch']
  #allocation2 [shape = 'f32[8,128]{1,0:T(8,128)}', space=vmem, size = 0x1000, scoped, tag = 'scratch operand']
  %s0 = inlined_call_operand.vmem [shape: f32[8,512], index: 0, kind: input, shape index: {}]
  %s1 = inlined_call_operand.vmem [shape: bf16[512,256], index: 1, kind: input, shape index: {}]
  %s2 = inlined_call_operand.vmem [shape: f32[1,256], index: 2, kind: input, shape index: {}]
  %s3 = inlined_call_operand.hbm [shape: f32[8,256], index: 3, kind: output, shape index: {}]
  %s4 = sld [smem:[#allocation0]]
  $region94: #{language_embedder.1} parent=0
    _
  %s6 = ssub.s32 1, %s4
  %s7 = scalar_select 0, %s6, %s4
  $region1: #{language_embedder.1} parent=0
    #allocation3 [shape = 'u8[262144]{0}', space=vmem, size = 0x40000, scoped, tag = 'input window, operand 1']
    #allocation4 [shape = 'u8[8192]{0}', space=vmem, size = 0x2000, scoped, tag = 'output window, operand 0']
    #allocation5 [shape = 's32[2]{0}', space=sflag, size = 0x8, scoped, tag = 'scoped memory for language_embedder.1']
    %8 = vsyncpa [#allocation5], 0
    %s9 = scalar_lea.sflag [#allocation5], 1
    %10 = vsyncpa %s9, 0
    loop: start=0, step=1, limit=4
    $region2: #{language_embedder.1} parent=1 // loop_pre_header
      _
    $region3: #{language_embedder.1} parent=1 // loop_header
      %s12 = sphi 0, %s16
      %p13 = scmp.ge.s32.totalorder %s12, 4
      %s19 = sphi 0, %s31
      %s20 = sphi 0, %s27
      %s21 = sphi 0, %s19
      %s22 = sphi 0, %s20
      %s23 = sphi 0, %s21
      %s24 = sphi 0, %s22
      %s34 = sphi 0, %s36
      %s37 = sphi 0, %s34
      %s38 = sphi 0, %s37
      %s54 = sphi 0, %s38
      %s62 = sphi 0, %s64
      %s65 = sphi 0, %s62
      %s66 = sphi 0, %s65
      %s82 = sphi 0, %s66
      %s88 = sphi 0, %s90
      %s91 = sphi 0, %s88
      %s92 = sphi 0, %s91
      %s108 = sphi 0, %s92
      %s114 = sphi 0, %s116
      %s117 = sphi 0, %s114
      %s118 = sphi 0, %s117
      %s134 = sphi 0, %s118
    $region4: #{language_embedder.1} parent=1 // loop_header_branch
      %15 = sbr.rel (%p13) target = $region8
    $region5: #{language_embedder.1} parent=1 // loop_body
      %s17 = ssub.s32 %s12, 1
      %s18 = ssub.s32 %s12, 2
      %s25 = sadd.s32 1, %s20
      %p26 = scmp.ge.s32.totalorder %s25, 1
      %s27 = scalar_select %p26, 0, %s25
      %s28 = sadd.s32 1, %s19
      %s29 = scalar_select %p26, %s28, %s19
      %p30 = scmp.ge.s32.totalorder %s29, 2
      %s31 = scalar_select %p30, 0, %s29
      %s32 = ssub.s32 %s20, %s27
      %p33 = scmp.eq.s32.totalorder %s32, 0
      %s35 = sadd.s32 %s34, 1
      %s36 = scalar_select %p33, %s34, %s35
      %p39 = pneg %p33
      %p40 = scmp.eq.s32.totalorder %s12, 1
      %p41 = por %p39, %p40
      %p42 = scmp.ne.s32.totalorder %s34, %s37
      %p43 = scmp.eq.s32.totalorder %s12, 0
      %p44 = por %p42, %p43
      %p45 = scmp.ne.s32.totalorder %s34, %s37
      %p46 = scmp.eq.s32.totalorder %s17, 1
      %p47 = por %p45, %p46
      %p48 = scmp.ne.s32.totalorder %s37, %s38
      %p49 = scmp.eq.s32.totalorder %s17, 0
      %p50 = por %p48, %p49
      %p51 = scmp.ne.s32.totalorder %s37, %s38
      %p52 = scmp.eq.s32.totalorder %s18, 1
      %p53 = por %p51, %p52
      %p55 = scmp.ne.s32.totalorder %s38, %s54
      %p56 = scmp.eq.s32.totalorder %s18, 0
      %p57 = por %p55, %p56
      %s58 = ssub.s32 %s20, %s27
      %s59 = ssub.s32 %s19, %s31
      %s60 = sor.u32 %s58, %s59
      %p61 = scmp.eq.s32.totalorder %s60, 0
      %s63 = sadd.s32 %s62, 1
      %s64 = scalar_select %p61, %s62, %s63
      %p67 = pneg %p61
      %p68 = scmp.eq.s32.totalorder %s12, 1
      %p69 = por %p67, %p68
      %p70 = scmp.ne.s32.totalorder %s62, %s65
      %p71 = scmp.eq.s32.totalorder %s12, 0
      %p72 = por %p70, %p71
      %p73 = scmp.ne.s32.totalorder %s62, %s65
      %p74 = scmp.eq.s32.totalorder %s17, 1
      %p75 = por %p73, %p74
      %p76 = scmp.ne.s32.totalorder %s65, %s66
      %p77 = scmp.eq.s32.totalorder %s17, 0
      %p78 = por %p76, %p77
      %p79 = scmp.ne.s32.totalorder %s65, %s66
      %p80 = scmp.eq.s32.totalorder %s18, 1
      %p81 = por %p79, %p80
      %p83 = scmp.ne.s32.totalorder %s66, %s82
      %p84 = scmp.eq.s32.totalorder %s18, 0
      %p85 = por %p83, %p84
      %s86 = ssub.s32 %s19, %s31
      %p87 = scmp.eq.s32.totalorder %s86, 0
      %s89 = sadd.s32 %s88, 1
      %s90 = scalar_select %p87, %s88, %s89
      %p93 = pneg %p87
      %p94 = scmp.eq.s32.totalorder %s12, 1
      %p95 = por %p93, %p94
      %p96 = scmp.ne.s32.totalorder %s88, %s91
      %p97 = scmp.eq.s32.totalorder %s12, 0
      %p98 = por %p96, %p97
      %p99 = scmp.ne.s32.totalorder %s88, %s91
      %p100 = scmp.eq.s32.totalorder %s17, 1
      %p101 = por %p99, %p100
      %p102 = scmp.ne.s32.totalorder %s91, %s92
      %p103 = scmp.eq.s32.totalorder %s17, 0
      %p104 = por %p102, %p103
      %p105 = scmp.ne.s32.totalorder %s91, %s92
      %p106 = scmp.eq.s32.totalorder %s18, 1
      %p107 = por %p105, %p106
      %p109 = scmp.ne.s32.totalorder %s92, %s108
      %p110 = scmp.eq.s32.totalorder %s18, 0
      %p111 = por %p109, %p110
      %s112 = ssub.s32 %s19, %s31
      %p113 = scmp.eq.s32.totalorder %s112, 0
      %s115 = sadd.s32 %s114, 1
      %s116 = scalar_select %p113, %s114, %s115
      %p119 = pneg %p113
      %p120 = scmp.eq.s32.totalorder %s12, 1
      %p121 = por %p119, %p120
      %p122 = scmp.ne.s32.totalorder %s114, %s117
      %p123 = scmp.eq.s32.totalorder %s12, 0
      %p124 = por %p122, %p123
      %p125 = scmp.ne.s32.totalorder %s114, %s117
      %p126 = scmp.eq.s32.totalorder %s17, 1
      %p127 = por %p125, %p126
      %p128 = scmp.ne.s32.totalorder %s117, %s118
      %p129 = scmp.eq.s32.totalorder %s17, 0
      %p130 = por %p128, %p129
      %p131 = scmp.ne.s32.totalorder %s117, %s118
      %p132 = scmp.eq.s32.totalorder %s18, 1
      %p133 = por %p131, %p132
      %p135 = scmp.ne.s32.totalorder %s118, %s134
      %p136 = scmp.eq.s32.totalorder %s18, 0
      %p137 = por %p135, %p136
      %p138 = scmp.le.s32.totalorder 1, %s12
      %p139 = scmp.lt.s32.totalorder %s12, 3
      %p140 = pnand %p138, %p139
      %p141 = pneg %p140
      // Predicated region
      $region9: #{language_embedder.1} parent=5 // pred_check
        _
      $region10: #{language_embedder.1} parent=5 // pred_check_branch
        %143 = sbr.rel (%p140) target = $region12
      $region11: #{language_embedder.1} parent=5 // pred_region
        %s144 = ssub.s32 %s12, 1
        // Predicated region
        $region13: #{language_embedder.1} parent=11 // pred_check
          %p145 = pneg %p50
        $region14: #{language_embedder.1} parent=11 // pred_check_branch
          %147 = sbr.rel (%p145) target = $region16
        $region15: #{language_embedder.1} parent=11 // pred_region
          %s148 = smul.u32 4, %s22
          %p149 = scmp.lt.s32.totalorder %s148, 3
          %s150 = scalar_select %p149, %s148, 3
          %s151 = smul.addr %s150, 8
          %s152 = scalar_lea.vmem %s0, %s151
          %s153 = smul.u32 4, %s22
        $region16: #{language_embedder.1} parent=11 // pred_fallthru
          _
      $region12: #{language_embedder.1} parent=5 // pred_fallthru
        _
      %p154 = scmp.lt.s32.totalorder %s12, 2
      // Predicated region
      $region17: #{language_embedder.1} parent=5 // pred_check
        %p155 = pneg %p154
      $region18: #{language_embedder.1} parent=5 // pred_check_branch
        %157 = sbr.rel (%p155) target = $region20
      $region19: #{language_embedder.1} parent=5 // pred_region
        // Predicated region
        $region21: #{language_embedder.1} parent=19 // pred_check
          %p158 = pneg %p72
        $region22: #{language_embedder.1} parent=19 // pred_check_branch
          %160 = sbr.rel (%p158) target = $region24
        $region23: #{language_embedder.1} parent=19 // pred_region
          %s161 = sand.u32 %s62, 1
          %s162 = sand.u32 %s62, 1
          %s163 = smul.addr %s162, 256
          %s164 = scalar_lea.vmem [#allocation3], %s163
          %s165 = smul.u32 64, %s20
          %s166 = smul.addr %s165, 2
          %s167 = sadd.s32 %s19, %s166
          %s168 = smul.addr %s167, 4
          %s169 = scalar_lea.vmem %s1, %s168
          // Predicated region
          $region25: #{language_embedder.1} parent=23 // pred_check
            _
          $region26: #{language_embedder.1} parent=23 // pred_check_branch
            %171 = sbr.rel (0) target = $region28
          $region27: #{language_embedder.1} parent=23 // pred_region
            // Predicated region
            $region29: #{language_embedder.1} parent=27 // pred_check
              _
            $region30: #{language_embedder.1} parent=27 // pred_check_branch
              %173 = sbr.rel target = $region32
            $region31: #{language_embedder.1} parent=27 // pred_region
              // Predicated region
              $region44: #{language_embedder.1} parent=31 // pred_check
                _
              $region45: #{language_embedder.1} parent=31 // pred_check_branch
                %315 = sbr.rel (0) target = $region47
              $region46: #{language_embedder.1} parent=31 // pred_region
                loop: start=0, step=1, limit=1
                $region48: #{language_embedder.1} parent=46 // loop_pre_header
                  _
                $region49: #{language_embedder.1} parent=46 // loop_header
                  %s317 = sphi 0, %s321
                  %p318 = scmp.ge.s32.totalorder %s317, 1
                  %s322 = sphi %s169, %s169
                  %s323 = sphi %s164, %s164
                $region50: #{language_embedder.1} parent=46 // loop_header_branch
                  %320 = sbr.rel (%p318) target = $region54
                $region51: #{language_embedder.1} parent=46 // loop_body
                  _
                $region52: #{language_embedder.1} parent=46 // loop_footer
                  %s321 = sadd.s32 1, %s317
                $region53: #{language_embedder.1} parent=46 // loop_footer_branch
                  %316 = sbr.rel target = $region49
                $region54: #{language_embedder.1} parent=46 // loop_exit
                  _
                %s325 = ssub.s32 16, 1
                loop: start=0, step=1, limit=1
                $region55: #{language_embedder.1} parent=46 // loop_pre_header
                  _
                $region56: #{language_embedder.1} parent=46 // loop_header
                  %s327 = sphi 0, %s331
                  %p328 = scmp.ge.s32.totalorder %s327, 1
                  %s332 = sphi %s169, %s169
                  %s333 = sphi %s164, %s164
                $region57: #{language_embedder.1} parent=46 // loop_header_branch
                  %330 = sbr.rel (%p328) target = $region61
                $region58: #{language_embedder.1} parent=46 // loop_body
                  %v334 = vld [vmem:[%s332] sm:%s325]
                  %335 = vst [vmem:[%s333] sm:%s325] %v334
                  %v336 = vld [vmem:[%s332 + $0x8] sm:%s325]
                  %337 = vst [vmem:[%s333 + $0x4] sm:%s325] %v336
                  %v338 = vld [vmem:[%s332 + $0x10] sm:%s325]
                  %339 = vst [vmem:[%s333 + $0x8] sm:%s325] %v338
                  %v340 = vld [vmem:[%s332 + $0x18] sm:%s325]
                  %341 = vst [vmem:[%s333 + $0xc] sm:%s325] %v340
                  %v342 = vld [vmem:[%s332 + $0x20] sm:%s325]
                  %343 = vst [vmem:[%s333 + $0x10] sm:%s325] %v342
                  %v344 = vld [vmem:[%s332 + $0x28] sm:%s325]
                  %345 = vst [vmem:[%s333 + $0x14] sm:%s325] %v344
                  %v346 = vld [vmem:[%s332 + $0x30] sm:%s325]
                  %347 = vst [vmem:[%s333 + $0x18] sm:%s325] %v346
                  %v348 = vld [vmem:[%s332 + $0x38] sm:%s325]
                  %349 = vst [vmem:[%s333 + $0x1c] sm:%s325] %v348
                  %v350 = vld [vmem:[%s332 + $0x40] sm:%s325]
                  %351 = vst [vmem:[%s333 + $0x20] sm:%s325] %v350
                  %v352 = vld [vmem:[%s332 + $0x48] sm:%s325]
                  %353 = vst [vmem:[%s333 + $0x24] sm:%s325] %v352
                  %v354 = vld [vmem:[%s332 + $0x50] sm:%s325]
                  %355 = vst [vmem:[%s333 + $0x28] sm:%s325] %v354
                  %v356 = vld [vmem:[%s332 + $0x58] sm:%s325]
                  %357 = vst [vmem:[%s333 + $0x2c] sm:%s325] %v356
                  %v358 = vld [vmem:[%s332 + $0x60] sm:%s325]
                  %359 = vst [vmem:[%s333 + $0x30] sm:%s325] %v358
                  %v360 = vld [vmem:[%s332 + $0x68] sm:%s325]
                  %361 = vst [vmem:[%s333 + $0x34] sm:%s325] %v360
                  %v362 = vld [vmem:[%s332 + $0x70] sm:%s325]
                  %363 = vst [vmem:[%s333 + $0x38] sm:%s325] %v362
                  %v364 = vld [vmem:[%s332 + $0x78] sm:%s325]
                  %365 = vst [vmem:[%s333 + $0x3c] sm:%s325] %v364
                  %v366 = vld [vmem:[%s332 + $0x80] sm:%s325]
                  %367 = vst [vmem:[%s333 + $0x40] sm:%s325] %v366
                  %v368 = vld [vmem:[%s332 + $0x88] sm:%s325]
                  %369 = vst [vmem:[%s333 + $0x44] sm:%s325] %v368
                  %v370 = vld [vmem:[%s332 + $0x90] sm:%s325]
                  %371 = vst [vmem:[%s333 + $0x48] sm:%s325] %v370
                  %v372 = vld [vmem:[%s332 + $0x98] sm:%s325]
                  %373 = vst [vmem:[%s333 + $0x4c] sm:%s325] %v372
                  %v374 = vld [vmem:[%s332 + $0xa0] sm:%s325]
                  %375 = vst [vmem:[%s333 + $0x50] sm:%s325] %v374
                  %v376 = vld [vmem:[%s332 + $0xa8] sm:%s325]
                  %377 = vst [vmem:[%s333 + $0x54] sm:%s325] %v376
                  %v378 = vld [vmem:[%s332 + $0xb0] sm:%s325]
                  %379 = vst [vmem:[%s333 + $0x58] sm:%s325] %v378
                  %v380 = vld [vmem:[%s332 + $0xb8] sm:%s325]
                  %381 = vst [vmem:[%s333 + $0x5c] sm:%s325] %v380
                  %v382 = vld [vmem:[%s332 + $0xc0] sm:%s325]
                  %383 = vst [vmem:[%s333 + $0x60] sm:%s325] %v382
                  %v384 = vld [vmem:[%s332 + $0xc8] sm:%s325]
                  %385 = vst [vmem:[%s333 + $0x64] sm:%s325] %v384
                  %v386 = vld [vmem:[%s332 + $0xd0] sm:%s325]
                  %387 = vst [vmem:[%s333 + $0x68] sm:%s325] %v386
                  %v388 = vld [vmem:[%s332 + $0xd8] sm:%s325]
                  %389 = vst [vmem:[%s333 + $0x6c] sm:%s325] %v388
                  %v390 = vld [vmem:[%s332 + $0xe0] sm:%s325]
                  %391 = vst [vmem:[%s333 + $0x70] sm:%s325] %v390
                  %v392 = vld [vmem:[%s332 + $0xe8] sm:%s325]
                  %393 = vst [vmem:[%s333 + $0x74] sm:%s325] %v392
                  %v394 = vld [vmem:[%s332 + $0xf0] sm:%s325]
                  %395 = vst [vmem:[%s333 + $0x78] sm:%s325] %v394
                  %v396 = vld [vmem:[%s332 + $0xf8] sm:%s325]
                  %397 = vst [vmem:[%s333 + $0x7c] sm:%s325] %v396
                  %v398 = vld [vmem:[%s332 + $0x100] sm:%s325]
                  %399 = vst [vmem:[%s333 + $0x80] sm:%s325] %v398
                  %v400 = vld [vmem:[%s332 + $0x108] sm:%s325]
                  %401 = vst [vmem:[%s333 + $0x84] sm:%s325] %v400
                  %v402 = vld [vmem:[%s332 + $0x110] sm:%s325]
                  %403 = vst [vmem:[%s333 + $0x88] sm:%s325] %v402
                  %v404 = vld [vmem:[%s332 + $0x118] sm:%s325]
                  %405 = vst [vmem:[%s333 + $0x8c] sm:%s325] %v404
                  %v406 = vld [vmem:[%s332 + $0x120] sm:%s325]
                  %407 = vst [vmem:[%s333 + $0x90] sm:%s325] %v406
                  %v408 = vld [vmem:[%s332 + $0x128] sm:%s325]
                  %409 = vst [vmem:[%s333 + $0x94] sm:%s325] %v408
                  %v410 = vld [vmem:[%s332 + $0x130] sm:%s325]
                  %411 = vst [vmem:[%s333 + $0x98] sm:%s325] %v410
                  %v412 = vld [vmem:[%s332 + $0x138] sm:%s325]
                  %413 = vst [vmem:[%s333 + $0x9c] sm:%s325] %v412
                  %v414 = vld [vmem:[%s332 + $0x140] sm:%s325]
                  %415 = vst [vmem:[%s333 + $0xa0] sm:%s325] %v414
                  %v416 = vld [vmem:[%s332 + $0x148] sm:%s325]
                  %417 = vst [vmem:[%s333 + $0xa4] sm:%s325] %v416
                  %v418 = vld [vmem:[%s332 + $0x150] sm:%s325]
                  %419 = vst [vmem:[%s333 + $0xa8] sm:%s325] %v418
                  %v420 = vld [vmem:[%s332 + $0x158] sm:%s325]
                  %421 = vst [vmem:[%s333 + $0xac] sm:%s325] %v420
                  %v422 = vld [vmem:[%s332 + $0x160] sm:%s325]
                  %423 = vst [vmem:[%s333 + $0xb0] sm:%s325] %v422
                  %v424 = vld [vmem:[%s332 + $0x168] sm:%s325]
                  %425 = vst [vmem:[%s333 + $0xb4] sm:%s325] %v424
                  %v426 = vld [vmem:[%s332 + $0x170] sm:%s325]
                  %427 = vst [vmem:[%s333 + $0xb8] sm:%s325] %v426
                  %v428 = vld [vmem:[%s332 + $0x178] sm:%s325]
                  %429 = vst [vmem:[%s333 + $0xbc] sm:%s325] %v428
                  %v430 = vld [vmem:[%s332 + $0x180] sm:%s325]
                  %431 = vst [vmem:[%s333 + $0xc0] sm:%s325] %v430
                  %v432 = vld [vmem:[%s332 + $0x188] sm:%s325]
                  %433 = vst [vmem:[%s333 + $0xc4] sm:%s325] %v432
                  %v434 = vld [vmem:[%s332 + $0x190] sm:%s325]
                  %435 = vst [vmem:[%s333 + $0xc8] sm:%s325] %v434
                  %v436 = vld [vmem:[%s332 + $0x198] sm:%s325]
                  %437 = vst [vmem:[%s333 + $0xcc] sm:%s325] %v436
                  %v438 = vld [vmem:[%s332 + $0x1a0] sm:%s325]
                  %439 = vst [vmem:[%s333 + $0xd0] sm:%s325] %v438
                  %v440 = vld [vmem:[%s332 + $0x1a8] sm:%s325]
                  %441 = vst [vmem:[%s333 + $0xd4] sm:%s325] %v440
                  %v442 = vld [vmem:[%s332 + $0x1b0] sm:%s325]
                  %443 = vst [vmem:[%s333 + $0xd8] sm:%s325] %v442
                  %v444 = vld [vmem:[%s332 + $0x1b8] sm:%s325]
                  %445 = vst [vmem:[%s333 + $0xdc] sm:%s325] %v444
                  %v446 = vld [vmem:[%s332 + $0x1c0] sm:%s325]
                  %447 = vst [vmem:[%s333 + $0xe0] sm:%s325] %v446
                  %v448 = vld [vmem:[%s332 + $0x1c8] sm:%s325]
                  %449 = vst [vmem:[%s333 + $0xe4] sm:%s325] %v448
                  %v450 = vld [vmem:[%s332 + $0x1d0] sm:%s325]
                  %451 = vst [vmem:[%s333 + $0xe8] sm:%s325] %v450
                  %v452 = vld [vmem:[%s332 + $0x1d8] sm:%s325]
                  %453 = vst [vmem:[%s333 + $0xec] sm:%s325] %v452
                  %v454 = vld [vmem:[%s332 + $0x1e0] sm:%s325]
                  %455 = vst [vmem:[%s333 + $0xf0] sm:%s325] %v454
                  %v456 = vld [vmem:[%s332 + $0x1e8] sm:%s325]
                  %457 = vst [vmem:[%s333 + $0xf4] sm:%s325] %v456
                  %v458 = vld [vmem:[%s332 + $0x1f0] sm:%s325]
                  %459 = vst [vmem:[%s333 + $0xf8] sm:%s325] %v458
                  %v460 = vld [vmem:[%s332 + $0x1f8] sm:%s325]
                  %461 = vst [vmem:[%s333 + $0xfc] sm:%s325] %v460
                $region59: #{language_embedder.1} parent=46 // loop_footer
                  %s331 = sadd.s32 1, %s327
                $region60: #{language_embedder.1} parent=46 // loop_footer_branch
                  %326 = sbr.rel target = $region56
                $region61: #{language_embedder.1} parent=46 // loop_exit
                  _
              $region47: #{language_embedder.1} parent=31 // pred_fallthru
                _
            $region32: #{language_embedder.1} parent=27 // pred_fallthru
              _
            // Predicated region
            $region33: #{language_embedder.1} parent=27 // pred_check
              _
            $region34: #{language_embedder.1} parent=27 // pred_check_branch
              %175 = sbr.rel (0) target = $region36
            $region35: #{language_embedder.1} parent=27 // pred_region
              %s177 = ssub.s32 16, 1
              loop: start=0, step=1, limit=1
              $region37: #{language_embedder.1} parent=35 // loop_pre_header
                _
              $region38: #{language_embedder.1} parent=35 // loop_header
                %s179 = sphi 0, %s183
                %p180 = scmp.ge.s32.totalorder %s179, 1
                %s184 = sphi %s169, %s169
                %s185 = sphi %s164, %s164
              $region39: #{language_embedder.1} parent=35 // loop_header_branch
                %182 = sbr.rel (%p180) target = $region43
              $region40: #{language_embedder.1} parent=35 // loop_body
                %v186 = vld [vmem:[%s184] sm:%s177]
                %187 = vst [vmem:[%s185] sm:%s177] %v186
                %v188 = vld [vmem:[%s184 + $0x8] sm:%s177]
                %189 = vst [vmem:[%s185 + $0x4] sm:%s177] %v188
                %v190 = vld [vmem:[%s184 + $0x10] sm:%s177]
                %191 = vst [vmem:[%s185 + $0x8] sm:%s177] %v190
                %v192 = vld [vmem:[%s184 + $0x18] sm:%s177]
                %193 = vst [vmem:[%s185 + $0xc] sm:%s177] %v192
                %v194 = vld [vmem:[%s184 + $0x20] sm:%s177]
                %195 = vst [vmem:[%s185 + $0x10] sm:%s177] %v194
                %v196 = vld [vmem:[%s184 + $0x28] sm:%s177]
                %197 = vst [vmem:[%s185 + $0x14] sm:%s177] %v196
                %v198 = vld [vmem:[%s184 + $0x30] sm:%s177]
                %199 = vst [vmem:[%s185 + $0x18] sm:%s177] %v198
                %v200 = vld [vmem:[%s184 + $0x38] sm:%s177]
                %201 = vst [vmem:[%s185 + $0x1c] sm:%s177] %v200
                %v202 = vld [vmem:[%s184 + $0x40] sm:%s177]
                %203 = vst [vmem:[%s185 + $0x20] sm:%s177] %v202
                %v204 = vld [vmem:[%s184 + $0x48] sm:%s177]
                %205 = vst [vmem:[%s185 + $0x24] sm:%s177] %v204
                %v206 = vld [vmem:[%s184 + $0x50] sm:%s177]
                %207 = vst [vmem:[%s185 + $0x28] sm:%s177] %v206
                %v208 = vld [vmem:[%s184 + $0x58] sm:%s177]
                %209 = vst [vmem:[%s185 + $0x2c] sm:%s177] %v208
                %v210 = vld [vmem:[%s184 + $0x60] sm:%s177]
                %211 = vst [vmem:[%s185 + $0x30] sm:%s177] %v210
                %v212 = vld [vmem:[%s184 + $0x68] sm:%s177]
                %213 = vst [vmem:[%s185 + $0x34] sm:%s177] %v212
                %v214 = vld [vmem:[%s184 + $0x70] sm:%s177]
                %215 = vst [vmem:[%s185 + $0x38] sm:%s177] %v214
                %v216 = vld [vmem:[%s184 + $0x78] sm:%s177]
                %217 = vst [vmem:[%s185 + $0x3c] sm:%s177] %v216
                %v218 = vld [vmem:[%s184 + $0x80] sm:%s177]
                %219 = vst [vmem:[%s185 + $0x40] sm:%s177] %v218
                %v220 = vld [vmem:[%s184 + $0x88] sm:%s177]
                %221 = vst [vmem:[%s185 + $0x44] sm:%s177] %v220
                %v222 = vld [vmem:[%s184 + $0x90] sm:%s177]
                %223 = vst [vmem:[%s185 + $0x48] sm:%s177] %v222
                %v224 = vld [vmem:[%s184 + $0x98] sm:%s177]
                %225 = vst [vmem:[%s185 + $0x4c] sm:%s177] %v224
                %v226 = vld [vmem:[%s184 + $0xa0] sm:%s177]
                %227 = vst [vmem:[%s185 + $0x50] sm:%s177] %v226
                %v228 = vld [vmem:[%s184 + $0xa8] sm:%s177]
                %229 = vst [vmem:[%s185 + $0x54] sm:%s177] %v228
                %v230 = vld [vmem:[%s184 + $0xb0] sm:%s177]
                %231 = vst [vmem:[%s185 + $0x58] sm:%s177] %v230
                %v232 = vld [vmem:[%s184 + $0xb8] sm:%s177]
                %233 = vst [vmem:[%s185 + $0x5c] sm:%s177] %v232
                %v234 = vld [vmem:[%s184 + $0xc0] sm:%s177]
                %235 = vst [vmem:[%s185 + $0x60] sm:%s177] %v234
                %v236 = vld [vmem:[%s184 + $0xc8] sm:%s177]
                %237 = vst [vmem:[%s185 + $0x64] sm:%s177] %v236
                %v238 = vld [vmem:[%s184 + $0xd0] sm:%s177]
                %239 = vst [vmem:[%s185 + $0x68] sm:%s177] %v238
                %v240 = vld [vmem:[%s184 + $0xd8] sm:%s177]
                %241 = vst [vmem:[%s185 + $0x6c] sm:%s177] %v240
                %v242 = vld [vmem:[%s184 + $0xe0] sm:%s177]
                %243 = vst [vmem:[%s185 + $0x70] sm:%s177] %v242
                %v244 = vld [vmem:[%s184 + $0xe8] sm:%s177]
                %245 = vst [vmem:[%s185 + $0x74] sm:%s177] %v244
                %v246 = vld [vmem:[%s184 + $0xf0] sm:%s177]
                %247 = vst [vmem:[%s185 + $0x78] sm:%s177] %v246
                %v248 = vld [vmem:[%s184 + $0xf8] sm:%s177]
                %249 = vst [vmem:[%s185 + $0x7c] sm:%s177] %v248
                %v250 = vld [vmem:[%s184 + $0x100] sm:%s177]
                %251 = vst [vmem:[%s185 + $0x80] sm:%s177] %v250
                %v252 = vld [vmem:[%s184 + $0x108] sm:%s177]
                %253 = vst [vmem:[%s185 + $0x84] sm:%s177] %v252
                %v254 = vld [vmem:[%s184 + $0x110] sm:%s177]
                %255 = vst [vmem:[%s185 + $0x88] sm:%s177] %v254
                %v256 = vld [vmem:[%s184 + $0x118] sm:%s177]
                %257 = vst [vmem:[%s185 + $0x8c] sm:%s177] %v256
                %v258 = vld [vmem:[%s184 + $0x120] sm:%s177]
                %259 = vst [vmem:[%s185 + $0x90] sm:%s177] %v258
                %v260 = vld [vmem:[%s184 + $0x128] sm:%s177]
                %261 = vst [vmem:[%s185 + $0x94] sm:%s177] %v260
                %v262 = vld [vmem:[%s184 + $0x130] sm:%s177]
                %263 = vst [vmem:[%s185 + $0x98] sm:%s177] %v262
                %v264 = vld [vmem:[%s184 + $0x138] sm:%s177]
                %265 = vst [vmem:[%s185 + $0x9c] sm:%s177] %v264
                %v266 = vld [vmem:[%s184 + $0x140] sm:%s177]
                %267 = vst [vmem:[%s185 + $0xa0] sm:%s177] %v266
                %v268 = vld [vmem:[%s184 + $0x148] sm:%s177]
                %269 = vst [vmem:[%s185 + $0xa4] sm:%s177] %v268
                %v270 = vld [vmem:[%s184 + $0x150] sm:%s177]
                %271 = vst [vmem:[%s185 + $0xa8] sm:%s177] %v270
                %v272 = vld [vmem:[%s184 + $0x158] sm:%s177]
                %273 = vst [vmem:[%s185 + $0xac] sm:%s177] %v272
                %v274 = vld [vmem:[%s184 + $0x160] sm:%s177]
                %275 = vst [vmem:[%s185 + $0xb0] sm:%s177] %v274
                %v276 = vld [vmem:[%s184 + $0x168] sm:%s177]
                %277 = vst [vmem:[%s185 + $0xb4] sm:%s177] %v276
                %v278 = vld [vmem:[%s184 + $0x170] sm:%s177]
                %279 = vst [vmem:[%s185 + $0xb8] sm:%s177] %v278
                %v280 = vld [vmem:[%s184 + $0x178] sm:%s177]
                %281 = vst [vmem:[%s185 + $0xbc] sm:%s177] %v280
                %v282 = vld [vmem:[%s184 + $0x180] sm:%s177]
                %283 = vst [vmem:[%s185 + $0xc0] sm:%s177] %v282
                %v284 = vld [vmem:[%s184 + $0x188] sm:%s177]
                %285 = vst [vmem:[%s185 + $0xc4] sm:%s177] %v284
                %v286 = vld [vmem:[%s184 + $0x190] sm:%s177]
                %287 = vst [vmem:[%s185 + $0xc8] sm:%s177] %v286
                %v288 = vld [vmem:[%s184 + $0x198] sm:%s177]
                %289 = vst [vmem:[%s185 + $0xcc] sm:%s177] %v288
                %v290 = vld [vmem:[%s184 + $0x1a0] sm:%s177]
                %291 = vst [vmem:[%s185 + $0xd0] sm:%s177] %v290
                %v292 = vld [vmem:[%s184 + $0x1a8] sm:%s177]
                %293 = vst [vmem:[%s185 + $0xd4] sm:%s177] %v292
                %v294 = vld [vmem:[%s184 + $0x1b0] sm:%s177]
                %295 = vst [vmem:[%s185 + $0xd8] sm:%s177] %v294
                %v296 = vld [vmem:[%s184 + $0x1b8] sm:%s177]
                %297 = vst [vmem:[%s185 + $0xdc] sm:%s177] %v296
                %v298 = vld [vmem:[%s184 + $0x1c0] sm:%s177]
                %299 = vst [vmem:[%s185 + $0xe0] sm:%s177] %v298
                %v300 = vld [vmem:[%s184 + $0x1c8] sm:%s177]
                %301 = vst [vmem:[%s185 + $0xe4] sm:%s177] %v300
                %v302 = vld [vmem:[%s184 + $0x1d0] sm:%s177]
                %303 = vst [vmem:[%s185 + $0xe8] sm:%s177] %v302
                %v304 = vld [vmem:[%s184 + $0x1d8] sm:%s177]
                %305 = vst [vmem:[%s185 + $0xec] sm:%s177] %v304
                %v306 = vld [vmem:[%s184 + $0x1e0] sm:%s177]
                %307 = vst [vmem:[%s185 + $0xf0] sm:%s177] %v306
                %v308 = vld [vmem:[%s184 + $0x1e8] sm:%s177]
                %309 = vst [vmem:[%s185 + $0xf4] sm:%s177] %v308
                %v310 = vld [vmem:[%s184 + $0x1f0] sm:%s177]
                %311 = vst [vmem:[%s185 + $0xf8] sm:%s177] %v310
                %v312 = vld [vmem:[%s184 + $0x1f8] sm:%s177]
                %313 = vst [vmem:[%s185 + $0xfc] sm:%s177] %v312
              $region41: #{language_embedder.1} parent=35 // loop_footer
                %s183 = sadd.s32 1, %s179
              $region42: #{language_embedder.1} parent=35 // loop_footer_branch
                %178 = sbr.rel target = $region38
              $region43: #{language_embedder.1} parent=35 // loop_exit
                _
            $region36: #{language_embedder.1} parent=27 // pred_fallthru
              _
          $region28: #{language_embedder.1} parent=23 // pred_fallthru
            _
          %462 = vnop
        $region24: #{language_embedder.1} parent=19 // pred_fallthru
          _
        // Predicated region
        $region62: #{language_embedder.1} parent=19 // pred_check
          %p463 = pneg %p98
        $region63: #{language_embedder.1} parent=19 // pred_check_branch
          %465 = sbr.rel (%p463) target = $region65
        $region64: #{language_embedder.1} parent=19 // pred_region
          %p466 = scmp.lt.s32.totalorder %s19, 1
          %s467 = scalar_select %p466, %s19, 1
          %s468 = scalar_lea.vmem %s2, %s467
        $region65: #{language_embedder.1} parent=19 // pred_fallthru
          _
      $region20: #{language_embedder.1} parent=5 // pred_fallthru
        _
      %p469 = scmp.le.s32.totalorder 1, %s12
      %p470 = scmp.lt.s32.totalorder %s12, 3
      %p471 = pnand %p469, %p470
      %p472 = pneg %p471
      // Predicated region
      $region66: #{language_embedder.1} parent=5 // pred_check
        _
      $region67: #{language_embedder.1} parent=5 // pred_check_branch
        %474 = sbr.rel (%p471) target = $region69
      $region68: #{language_embedder.1} parent=5 // pred_region
        %s475 = ssub.s32 %s12, 1
        %s476 = sand.u32 %s65, 1
        %s477 = sand.u32 %s65, 1
        %s478 = smul.addr %s477, 256
        %s479 = scalar_lea.vmem [#allocation3], %s478
        // Predicated region
        $region70: #{language_embedder.1} parent=68 // pred_check
          %p480 = pneg %p78
        $region71: #{language_embedder.1} parent=68 // pred_check_branch
          %482 = sbr.rel (%p480) target = $region73
        $region72: #{language_embedder.1} parent=68 // pred_region
          _
        $region73: #{language_embedder.1} parent=68 // pred_fallthru
          _
        %s483 = smul.u32 4, %s22
        %p484 = scmp.lt.s32.totalorder %s483, 3
        %s485 = scalar_select %p484, %s483, 3
        %s486 = smul.addr %s485, 8
        %s487 = scalar_lea.vmem %s0, %s486
        %p488 = pneg %p50
        %p489 = pneg %p47
        %s490 = sand.u32 %s65, 1
        %s491 = sand.u32 %s65, 1
        %s492 = smul.addr %s491, 256
        %s493 = scalar_lea.vmem [#allocation3], %s492
        %p494 = pneg %p78
        %p495 = pneg %p75
        %p496 = scmp.lt.s32.totalorder %s21, 1
        %s497 = scalar_select %p496, %s21, 1
        %s498 = scalar_lea.vmem %s2, %s497
        %p499 = pneg %p104
        %p500 = pneg %p101
        %p501 = pneg %p130
        %p502 = pneg %p127
        %s503 = sand.u32 %s117, 1
        %s504 = scalar_lea.sflag [#allocation5], %s503
        %s505 = sand.u32 %s117, 1
        %s506 = smul.addr %s505, 8
        %s507 = scalar_lea.vmem [#allocation4], %s506
        %s508 = smul.u32 4, %s22
        %p509 = scmp.lt.s32.totalorder %s508, 3
        %s510 = scalar_select %p509, %s508, 3
        %s511 = smul.addr %s510, 8
        %s512 = scalar_lea.vmem %s0, %s511
        %s513 = smul.u32 4, %s22
        %s514 = smul.u32 64, %s22
        %p515 = scmp.lt.s32.totalorder %s21, 1
        %s516 = scalar_select %p515, %s21, 1
        %s517 = scalar_lea.vmem %s2, %s516
        %p519 = scmp.eq.s32.totalorder %s22, 0
        // Predicated region
        $region74: #{language_embedder.1} parent=68 // pred_check
          %p520 = pneg %p519
        $region75: #{language_embedder.1} parent=68 // pred_check_branch
          %522 = sbr.rel (%p520) target = $region77
        $region76: #{language_embedder.1} parent=68 // pred_region
          %523 = vst [vmem:[#allocation2] sm:$0xff] 0.0
        $region77: #{language_embedder.1} parent=68 // pred_fallthru
          _
        %v524 = vld [vmem:[%s512] sm:$0xff]
        %v525 = vld [vmem:[%s512 + $0x8] sm:$0xff]
        %v526 = vld [vmem:[%s512 + $0x10] sm:$0xff]
        %v527 = vld [vmem:[%s512 + $0x18] sm:$0xff]
        %v528 = vxor.u32 %v524, 2147483648
        %v529 = vxor.u32 %v525, 2147483648
        %v530 = vxor.u32 %v526, 2147483648
        %v531 = vxor.u32 %v527, 2147483648
        %v532 = vmul.f32 %v528, 1.442695
        %v533 = vpow.pop %v532
        %v534 = vmul.f32 %v529, 1.442695
        %v535 = vpow.pop %v534
        %v536 = vmul.f32 %v530, 1.442695
        %v537 = vpow.pop %v536
        %v538 = vmul.f32 %v531, 1.442695
        %v539 = vpow.pop %v538
        %v540 = vadd.f32 %v533, 1.0
        %v541 = vadd.f32 %v535, 1.0
        %v542 = vadd.f32 %v537, 1.0
        %v543 = vadd.f32 %v539, 1.0
        %v544 = vrcp.pop %v540
        %v545 = vmul.f32 1.0, %v544
        %v546 = vrcp.pop %v541
        %v547 = vmul.f32 1.0, %v546
        %v548 = vrcp.pop %v542
        %v549 = vmul.f32 1.0, %v548
        %v550 = vrcp.pop %v543
        %v551 = vmul.f32 1.0, %v550
        %v552 = vmul.f32 %v524, %v545
        %v553 = vmul.f32 %v525, %v547
        %v554 = vmul.f32 %v526, %v549
        %v555 = vmul.f32 %v527, %v551
        %v556 = vpack.c.bf16 %v552, %v552
        %v557 = vpack.c.bf16 %v553, %v553
        %v558 = vpack.c.bf16 %v554, %v554
        %v559 = vpack.c.bf16 %v555, %v555
        %v560 = vld [vmem:[#allocation2] sm:$0xff]
        %v561 = vld [vmem:[%s479] sm:$0xf]
        %v562 = vld [vmem:[%s479 + $0x4] sm:$0xf]
        %v563 = vld [vmem:[%s479 + $0x8] sm:$0xf]
        %v564 = vld [vmem:[%s479 + $0xc] sm:$0xf]
        %v565 = vld [vmem:[%s479 + $0x10] sm:$0xf]
        %v566 = vld [vmem:[%s479 + $0x14] sm:$0xf]
        %v567 = vld [vmem:[%s479 + $0x18] sm:$0xf]
        %v568 = vld [vmem:[%s479 + $0x1c] sm:$0xf]
        %v569 = vld [vmem:[%s479 + $0x20] sm:$0xf]
        %v570 = vld [vmem:[%s479 + $0x24] sm:$0xf]
        %v571 = vld [vmem:[%s479 + $0x28] sm:$0xf]
        %v572 = vld [vmem:[%s479 + $0x2c] sm:$0xf]
        %v573 = vld [vmem:[%s479 + $0x30] sm:$0xf]
        %v574 = vld [vmem:[%s479 + $0x34] sm:$0xf]
        %v575 = vld [vmem:[%s479 + $0x38] sm:$0xf]
        %v576 = vld [vmem:[%s479 + $0x3c] sm:$0xf]
        %v577 = vld [vmem:[%s479 + $0x40] sm:$0xf]
        %v578 = vld [vmem:[%s479 + $0x44] sm:$0xf]
        %v579 = vld [vmem:[%s479 + $0x48] sm:$0xf]
        %v580 = vld [vmem:[%s479 + $0x4c] sm:$0xf]
        %v581 = vld [vmem:[%s479 + $0x50] sm:$0xf]
        %v582 = vld [vmem:[%s479 + $0x54] sm:$0xf]
        %v583 = vld [vmem:[%s479 + $0x58] sm:$0xf]
        %v584 = vld [vmem:[%s479 + $0x5c] sm:$0xf]
        %v585 = vld [vmem:[%s479 + $0x60] sm:$0xf]
        %v586 = vld [vmem:[%s479 + $0x64] sm:$0xf]
        %v587 = vld [vmem:[%s479 + $0x68] sm:$0xf]
        %v588 = vld [vmem:[%s479 + $0x6c] sm:$0xf]
        %v589 = vld [vmem:[%s479 + $0x70] sm:$0xf]
        %v590 = vld [vmem:[%s479 + $0x74] sm:$0xf]
        %v591 = vld [vmem:[%s479 + $0x78] sm:$0xf]
        %v592 = vld [vmem:[%s479 + $0x7c] sm:$0xf]
        %v593 = vld [vmem:[%s479 + $0x80] sm:$0xf]
        %v594 = vld [vmem:[%s479 + $0x84] sm:$0xf]
        %v595 = vld [vmem:[%s479 + $0x88] sm:$0xf]
        %v596 = vld [vmem:[%s479 + $0x8c] sm:$0xf]
        %v597 = vld [vmem:[%s479 + $0x90] sm:$0xf]
        %v598 = vld [vmem:[%s479 + $0x94] sm:$0xf]
        %v599 = vld [vmem:[%s479 + $0x98] sm:$0xf]
        %v600 = vld [vmem:[%s479 + $0x9c] sm:$0xf]
        %v601 = vld [vmem:[%s479 + $0xa0] sm:$0xf]
        %v602 = vld [vmem:[%s479 + $0xa4] sm:$0xf]
        %v603 = vld [vmem:[%s479 + $0xa8] sm:$0xf]
        %v604 = vld [vmem:[%s479 + $0xac] sm:$0xf]
        %v605 = vld [vmem:[%s479 + $0xb0] sm:$0xf]
        %v606 = vld [vmem:[%s479 + $0xb4] sm:$0xf]
        %v607 = vld [vmem:[%s479 + $0xb8] sm:$0xf]
        %v608 = vld [vmem:[%s479 + $0xbc] sm:$0xf]
        %v609 = vld [vmem:[%s479 + $0xc0] sm:$0xf]
        %v610 = vld [vmem:[%s479 + $0xc4] sm:$0xf]
        %v611 = vld [vmem:[%s479 + $0xc8] sm:$0xf]
        %v612 = vld [vmem:[%s479 + $0xcc] sm:$0xf]
        %v613 = vld [vmem:[%s479 + $0xd0] sm:$0xf]
        %v614 = vld [vmem:[%s479 + $0xd4] sm:$0xf]
        %v615 = vld [vmem:[%s479 + $0xd8] sm:$0xf]
        %v616 = vld [vmem:[%s479 + $0xdc] sm:$0xf]
        %v617 = vld [vmem:[%s479 + $0xe0] sm:$0xf]
        %v618 = vld [vmem:[%s479 + $0xe4] sm:$0xf]
        %v619 = vld [vmem:[%s479 + $0xe8] sm:$0xf]
        %v620 = vld [vmem:[%s479 + $0xec] sm:$0xf]
        %v621 = vld [vmem:[%s479 + $0xf0] sm:$0xf]
        %v622 = vld [vmem:[%s479 + $0xf4] sm:$0xf]
        %v623 = vld [vmem:[%s479 + $0xf8] sm:$0xf]
        %v624 = vld [vmem:[%s479 + $0xfc] sm:$0xf]
        %v689 = vunpack.c.l.b16 %v561
        %v690 = vunpack.c.l.b16 %v562
        %v691 = vunpack.c.l.b16 %v563
        %v692 = vunpack.c.l.b16 %v564
        %v693 = vunpack.c.l.b16 %v565
        %v694 = vunpack.c.l.b16 %v566
        %v695 = vunpack.c.l.b16 %v567
        %v696 = vunpack.c.l.b16 %v568
        %v697 = vunpack.c.l.b16 %v569
        %v698 = vunpack.c.l.b16 %v570
        %v699 = vunpack.c.l.b16 %v571
        %v700 = vunpack.c.l.b16 %v572
        %v701 = vunpack.c.l.b16 %v573
        %v702 = vunpack.c.l.b16 %v574
        %v703 = vunpack.c.l.b16 %v575
        %v704 = vunpack.c.l.b16 %v576
        %v705 = vunpack.c.l.b16 %v577
        %v706 = vunpack.c.l.b16 %v578
        %v707 = vunpack.c.l.b16 %v579
        %v708 = vunpack.c.l.b16 %v580
        %v709 = vunpack.c.l.b16 %v581
        %v710 = vunpack.c.l.b16 %v582
        %v711 = vunpack.c.l.b16 %v583
        %v712 = vunpack.c.l.b16 %v584
        %v713 = vunpack.c.l.b16 %v585
        %v714 = vunpack.c.l.b16 %v586
        %v715 = vunpack.c.l.b16 %v587
        %v716 = vunpack.c.l.b16 %v588
        %v717 = vunpack.c.l.b16 %v589
        %v718 = vunpack.c.l.b16 %v590
        %v719 = vunpack.c.l.b16 %v591
        %v720 = vunpack.c.l.b16 %v592
        %v721 = vunpack.c.l.b16 %v593
        %v722 = vunpack.c.l.b16 %v594
        %v723 = vunpack.c.l.b16 %v595
        %v724 = vunpack.c.l.b16 %v596
        %v725 = vunpack.c.l.b16 %v597
        %v726 = vunpack.c.l.b16 %v598
        %v727 = vunpack.c.l.b16 %v599
        %v728 = vunpack.c.l.b16 %v600
        %v729 = vunpack.c.l.b16 %v601
        %v730 = vunpack.c.l.b16 %v602
        %v731 = vunpack.c.l.b16 %v603
        %v732 = vunpack.c.l.b16 %v604
        %v733 = vunpack.c.l.b16 %v605
        %v734 = vunpack.c.l.b16 %v606
        %v735 = vunpack.c.l.b16 %v607
        %v736 = vunpack.c.l.b16 %v608
        %v737 = vunpack.c.l.b16 %v609
        %v738 = vunpack.c.l.b16 %v610
        %v739 = vunpack.c.l.b16 %v611
        %v740 = vunpack.c.l.b16 %v612
        %v741 = vunpack.c.l.b16 %v613
        %v742 = vunpack.c.l.b16 %v614
        %v743 = vunpack.c.l.b16 %v615
        %v744 = vunpack.c.l.b16 %v616
        %v745 = vunpack.c.l.b16 %v617
        %v746 = vunpack.c.l.b16 %v618
        %v747 = vunpack.c.l.b16 %v619
        %v748 = vunpack.c.l.b16 %v620
        %v749 = vunpack.c.l.b16 %v621
        %v750 = vunpack.c.l.b16 %v622
        %v751 = vunpack.c.l.b16 %v623
        %v752 = vunpack.c.l.b16 %v624
        %v753 = vpack.c.b16 %v690, %v689
        %v754 = vpack.c.b16 %v692, %v691
        %v755 = vpack.c.b16 %v694, %v693
        %v756 = vpack.c.b16 %v696, %v695
        %v757 = vpack.c.b16 %v698, %v697
        %v758 = vpack.c.b16 %v700, %v699
        %v759 = vpack.c.b16 %v702, %v701
        %v760 = vpack.c.b16 %v704, %v703
        %v761 = vpack.c.b16 %v706, %v705
        %v762 = vpack.c.b16 %v708, %v707
        %v763 = vpack.c.b16 %v710, %v709
        %v764 = vpack.c.b16 %v712, %v711
        %v765 = vpack.c.b16 %v714, %v713
        %v766 = vpack.c.b16 %v716, %v715
        %v767 = vpack.c.b16 %v718, %v717
        %v768 = vpack.c.b16 %v720, %v719
        %v769 = vpack.c.b16 %v722, %v721
        %v770 = vpack.c.b16 %v724, %v723
        %v771 = vpack.c.b16 %v726, %v725
        %v772 = vpack.c.b16 %v728, %v727
        %v773 = vpack.c.b16 %v730, %v729
        %v774 = vpack.c.b16 %v732, %v731
        %v775 = vpack.c.b16 %v734, %v733
        %v776 = vpack.c.b16 %v736, %v735
        %v777 = vpack.c.b16 %v738, %v737
        %v778 = vpack.c.b16 %v740, %v739
        %v779 = vpack.c.b16 %v742, %v741
        %v780 = vpack.c.b16 %v744, %v743
        %v781 = vpack.c.b16 %v746, %v745
        %v782 = vpack.c.b16 %v748, %v747
        %v783 = vpack.c.b16 %v750, %v749
        %v784 = vpack.c.b16 %v752, %v751
        %817 = vmatprep.subr.bf16.mxu0 0
        %818 = vmatpush1.bf16.msra.mxu0 %v760
        %819 = vmatprep.subr.bf16.mxu0 0
        %820 = vmatpush1.bf16.msra.mxu0 %v759
        %821 = vmatprep.subr.bf16.mxu0 0
        %822 = vmatpush1.bf16.msra.mxu0 %v758
        %823 = vmatprep.subr.bf16.mxu0 0
        %824 = vmatpush1.bf16.msra.mxu0 %v757
        %825 = vmatprep.subr.bf16.mxu0 0
        %826 = vmatpush1.bf16.msra.mxu0 %v756
        %827 = vmatprep.subr.bf16.mxu0 0
        %828 = vmatpush1.bf16.msra.mxu0 %v755
        %829 = vmatprep.subr.bf16.mxu0 0
        %830 = vmatpush1.bf16.msra.mxu0 %v754
        %831 = vmatprep.subr.bf16.mxu0 0
        %832 = vmatpush1.bf16.msra.mxu0 %v753
        %833 = vmatprep.subr.bf16.mxu0 0
        %834 = vmatpush2.bf16.msra.mxu0 %v768
        %835 = vmatprep.subr.bf16.mxu0 0
        %836 = vmatpush2.bf16.msra.mxu0 %v767
        %837 = vmatprep.subr.bf16.mxu0 0
        %838 = vmatpush2.bf16.msra.mxu0 %v766
        %839 = vmatprep.subr.bf16.mxu0 0
        %840 = vmatpush2.bf16.msra.mxu0 %v765
        %841 = vmatprep.subr.bf16.mxu0 0
        %842 = vmatpush2.bf16.msra.mxu0 %v764
        %843 = vmatprep.subr.bf16.mxu0 0
        %844 = vmatpush2.bf16.msra.mxu0 %v763
        %845 = vmatprep.subr.bf16.mxu0 0
        %846 = vmatpush2.bf16.msra.mxu0 %v762
        %847 = vmatprep.subr.bf16.mxu0 0
        %848 = vmatpush2.bf16.msra.mxu0 %v761
        %849 = vmatprep.mubr.bf16.mxu0 %v557
        %850 = vmatmul.mubr.bf16.gmra.mxu0 %v556
        %v851 = vpop.f32.mrf.mxu0
        %v852 = vadd.f32 0.0, %v851
        %v853 = vpop.f32.mrf.mxu0
        %v854 = vpop.f32.mrf.mxu0
        %v855 = vpop.f32.mrf.mxu0
        %856 = vdwg.mxu0
        %857 = vmatprep.subr.bf16.mxu0 0
        %858 = vmatpush1.bf16.msra.mxu0 %v776
        %859 = vmatprep.subr.bf16.mxu0 0
        %860 = vmatpush1.bf16.msra.mxu0 %v775
        %861 = vmatprep.subr.bf16.mxu0 0
        %862 = vmatpush1.bf16.msra.mxu0 %v774
        %863 = vmatprep.subr.bf16.mxu0 0
        %864 = vmatpush1.bf16.msra.mxu0 %v773
        %865 = vmatprep.subr.bf16.mxu0 0
        %866 = vmatpush1.bf16.msra.mxu0 %v772
        %867 = vmatprep.subr.bf16.mxu0 0
        %868 = vmatpush1.bf16.msra.mxu0 %v771
        %869 = vmatprep.subr.bf16.mxu0 0
        %870 = vmatpush1.bf16.msra.mxu0 %v770
        %871 = vmatprep.subr.bf16.mxu0 0
        %872 = vmatpush1.bf16.msra.mxu0 %v769
        %873 = vmatprep.subr.bf16.mxu0 0
        %874 = vmatpush2.bf16.msra.mxu0 %v784
        %875 = vmatprep.subr.bf16.mxu0 0
        %876 = vmatpush2.bf16.msra.mxu0 %v783
        %877 = vmatprep.subr.bf16.mxu0 0
        %878 = vmatpush2.bf16.msra.mxu0 %v782
        %879 = vmatprep.subr.bf16.mxu0 0
        %880 = vmatpush2.bf16.msra.mxu0 %v781
        %881 = vmatprep.subr.bf16.mxu0 0
        %882 = vmatpush2.bf16.msra.mxu0 %v780
        %883 = vmatprep.subr.bf16.mxu0 0
        %884 = vmatpush2.bf16.msra.mxu0 %v779
        %885 = vmatprep.subr.bf16.mxu0 0
        %886 = vmatpush2.bf16.msra.mxu0 %v778
        %887 = vmatprep.subr.bf16.mxu0 0
        %888 = vmatpush2.bf16.msra.mxu0 %v777
        %889 = vmatprep.mubr.bf16.mxu0 %v559
        %890 = vmatmul.mubr.bf16.gmra.mxu0 %v558
        %v891 = vpop.f32.mrf.mxu0
        %v892 = vadd.f32 %v852, %v891
        %v893 = vpop.f32.mrf.mxu0
        %v894 = vpop.f32.mrf.mxu0
        %v895 = vpop.f32.mrf.mxu0
        %896 = vdwg.mxu0
        %v897 = vadd.f32 %v560, %v892
        %898 = vst [vmem:[#allocation2] sm:$0xff] %v897
        // Predicated region
        $region78: #{language_embedder.1} parent=68 // pred_check
          %p899 = pneg %p519
        $region79: #{language_embedder.1} parent=68 // pred_check_branch
          %901 = sbr.rel (%p899) target = $region81
        $region80: #{language_embedder.1} parent=68 // pred_region
          %v902 = vld [vmem:[#allocation2] sm:$0xff]
          %v903 = vld [vmem:[%s517] sm:$0x1]
          %v905 = vlaneseq
          %v906 = vshrl.u32 %v905, 7
          %v907 = vsub.s32 0, %v906
          %v908 = vrot.slane %v903, %v907
          %v910 = vadd.f32 %v902, %v908
          %911 = vst [vmem:[%s507] sm:$0xff] %v910
        $region81: #{language_embedder.1} parent=68 // pred_fallthru
          _
        %s912 = sand.u32 %s117, 1
        %s913 = scalar_lea.sflag [#allocation5], %s912
        %s914 = sand.u32 %s117, 1
        %s915 = smul.addr %s914, 8
        %s916 = scalar_lea.vmem [#allocation4], %s915
        // Predicated region
        $region82: #{language_embedder.1} parent=68 // pred_check
          %p917 = pneg %p127
        $region83: #{language_embedder.1} parent=68 // pred_check_branch
          %919 = sbr.rel (%p917) target = $region85
        $region84: #{language_embedder.1} parent=68 // pred_region
          %s921 = ssub.s32 128, 128
          %922 = vsyncadd %s913, %s921
          %s923 = smul.addr %s21, 128
          %s924 = scalar_lea.hbm %s3, %s923
          %s926 = sshll.u32 %s916, 4
          %s927 = int_to_ptr.vmem [resolvable:$true] %s926
          %929 = dma.vmem_to_hbm [thread:$0]  %s927, 128, %s924, %s913
        $region85: #{language_embedder.1} parent=68 // pred_fallthru
          _
      $region69: #{language_embedder.1} parent=5 // pred_fallthru
        _
      %p930 = scmp.le.s32.totalorder 2, %s12
      // Predicated region
      $region86: #{language_embedder.1} parent=5 // pred_check
        %p931 = pneg %p930
      $region87: #{language_embedder.1} parent=5 // pred_check_branch
        %933 = sbr.rel (%p931) target = $region89
      $region88: #{language_embedder.1} parent=5 // pred_region
        %s934 = ssub.s32 %s12, 2
        // Predicated region
        $region90: #{language_embedder.1} parent=88 // pred_check
          %p935 = pneg %p133
        $region91: #{language_embedder.1} parent=88 // pred_check_branch
          %937 = sbr.rel (%p935) target = $region93
        $region92: #{language_embedder.1} parent=88 // pred_region
          %s938 = sand.u32 %s118, 1
          %s939 = scalar_lea.sflag [#allocation5], %s938
          %s940 = sand.u32 %s118, 1
          %s941 = smul.addr %s940, 8
          %s942 = scalar_lea.vmem [#allocation4], %s941
          %943 = dma.done %s939, 128
        $region93: #{language_embedder.1} parent=88 // pred_fallthru
          _
      $region89: #{language_embedder.1} parent=5 // pred_fallthru
        _
    $region6: #{language_embedder.1} parent=1 // loop_footer
      %s16 = sadd.s32 1, %s12
    $region7: #{language_embedder.1} parent=1 // loop_footer_branch
      %11 = sbr.rel target = $region3
    $region8: #{language_embedder.1} parent=1 // loop_exit
      _
    %944 = vsyncpa [#allocation5], 1
    %s945 = scalar_lea.sflag [#allocation5], 1
    %946 = vsyncpa %s945, 1

</llo_original>
